<compile_context>
chip_gen: v7x
topology: tpu7x:2x2x1
jax: 0.10.0
libtpu: 0.0.40
codegen_flags: <defaults>
</compile_context>

<pallas_src>
import jax
import jax.numpy as jnp
from jax import lax
from jax.experimental import pallas as pl
from jax.experimental.pallas import tpu as pltpu


# ----------------------------------------------------------------------------
# Model configuration
# ----------------------------------------------------------------------------

CONTEXT_CHANNELS = [3, 5, 5]       # tpos, POI, weather
CONTEXT_DIMS = [32, 32, 32]
INPUT_CHANNELS = [2, 2, 2, 1]      # bike, taxi, bus, speed
HIDDEN_NUM = 5                     # indices 1..4 are used by the decoders
HIDDEN_DIM = 64
DEC_OUT = sum(INPUT_CHANNELS)      # 7
DEC_PAD = 128                      # lane-dense decoder output (sliced to 7)


def _round_up(x, m):
    return (x + m - 1) // m * m


# ----------------------------------------------------------------------------
# Pallas kernels
# ----------------------------------------------------------------------------

def _linear_kernel(x_ref, w_ref, b_ref, o_ref):
    # y = x @ w + b  (bf16 MXU operands, f32 accumulate)
    o_ref[...] = (
        jnp.dot(x_ref[...].astype(jnp.bfloat16), w_ref[...].astype(jnp.bfloat16),
                preferred_element_type=jnp.float32)
        + b_ref[...]
    )


def _linear_tanh_kernel(x_ref, w_ref, b_ref, o_ref):
    y = (
        jnp.dot(x_ref[...].astype(jnp.bfloat16), w_ref[...].astype(jnp.bfloat16),
                preferred_element_type=jnp.float32)
        + b_ref[...]
    )
    o_ref[...] = jnp.tanh(y)


def linear_pallas(x2d, w, b, activation=None):
    """x2d: [M, K], w: [K, N], b: [N] -> [M, N] (f32). Row-tiled up to 256."""
    M, K = x2d.shape
    N = w.shape[1]
    tm = min(_round_up(M, 8), 256)
    Mp = _round_up(M, tm)
    if Mp != M:
        x2d = jnp.pad(x2d, ((0, Mp - M), (0, 0)))
    kernel = _linear_tanh_kernel if activation == "tanh" else _linear_kernel
    out = pl.pallas_call(
        kernel,
        out_shape=jax.ShapeDtypeStruct((Mp, N), jnp.float32),
        grid=(Mp // tm,),
        in_specs=[
            pl.BlockSpec((tm, K), lambda i: (i, 0)),
            pl.BlockSpec((K, N), lambda i: (0, 0)),
            pl.BlockSpec((1, N), lambda i: (0, 0)),
        ],
        out_specs=pl.BlockSpec((tm, N), lambda i: (i, 0)),
        compiler_params=pltpu.CompilerParams(dimension_semantics=("parallel",)),
    )(x2d, w, b.reshape(1, N))
    return out[:M] if Mp != M else out


def _post_z_kernel(h_ref, wz_ref, bz_ref, n_ref, wd_ref, bd_ref,
                   mu_ref, lv_ref, z_ref, rec_ref):
    # Fused: [z_mu | z_lv] = h @ Wz + bz ; z = mu + exp(0.5*lv)*noise ;
    #        rec = z[:, 1:5] @ Wdec_blockdiag + bdec
    hd = mu_ref.shape[-1]
    y = (
        jnp.dot(h_ref[...].astype(jnp.bfloat16), wz_ref[...].astype(jnp.bfloat16),
                preferred_element_type=jnp.float32)
        + bz_ref[...]
    )
    mu = y[:, :hd]
    lv = y[:, hd:]
    z = mu + jnp.exp(0.5 * lv) * n_ref[...]
    mu_ref[...] = mu
    lv_ref[...] = lv
    z_ref[...] = z
    z_sel = z[:, hd - wd_ref.shape[0]:]          # hidden slices 1..4 -> [tm, 4*D]
    rec_ref[...] = (
        jnp.dot(z_sel.astype(jnp.bfloat16), wd_ref[...].astype(jnp.bfloat16),
                preferred_element_type=jnp.float32)
        + bd_ref[...]
    )


def posterior_z_decode_pallas(hidden, wz, bz, noise, wdec, bdec):
    """hidden:[M,HD], wz:[HD,2HD], noise:[M,HD], wdec:[4D,128] ->
       (z_mu, z_lv, z, rec7) with rec7:[M,7]."""
    M, HDin = hidden.shape
    HD = wz.shape[1] // 2
    KD = wdec.shape[0]
    ND = wdec.shape[1]
    tm = min(_round_up(M, 8), 256)
    Mp = _round_up(M, tm)
    if Mp != M:
        hidden = jnp.pad(hidden, ((0, Mp - M), (0, 0)))
        noise = jnp.pad(noise, ((0, Mp - M), (0, 0)))
    mu, lv, z, rec = pl.pallas_call(
        _post_z_kernel,
        out_shape=(
            jax.ShapeDtypeStruct((Mp, HD), jnp.float32),
            jax.ShapeDtypeStruct((Mp, HD), jnp.float32),
            jax.ShapeDtypeStruct((Mp, HD), jnp.float32),
            jax.ShapeDtypeStruct((Mp, ND), jnp.float32),
        ),
        grid=(Mp // tm,),
        in_specs=[
            pl.BlockSpec((tm, HDin), lambda i: (i, 0)),
            pl.BlockSpec((HDin, 2 * HD), lambda i: (0, 0)),
            pl.BlockSpec((1, 2 * HD), lambda i: (0, 0)),
            pl.BlockSpec((tm, HD), lambda i: (i, 0)),
            pl.BlockSpec((KD, ND), lambda i: (0, 0)),
            pl.BlockSpec((1, ND), lambda i: (0, 0)),
        ],
        out_specs=(
            pl.BlockSpec((tm, HD), lambda i: (i, 0)),
            pl.BlockSpec((tm, HD), lambda i: (i, 0)),
            pl.BlockSpec((tm, HD), lambda i: (i, 0)),
            pl.BlockSpec((tm, ND), lambda i: (i, 0)),
        ),
        compiler_params=pltpu.CompilerParams(dimension_semantics=("parallel",)),
    )(hidden, wz, bz.reshape(1, -1), noise, wdec, bdec.reshape(1, -1))
    return mu[:M], lv[:M], z[:M], rec[:M, :DEC_OUT]


def _reparam_decode_kernel(mu_ref, lv_ref, n_ref, wd_ref, bd_ref, o_ref):
    # Fused generator: z = mu + exp(0.5*lv)*noise ; out = z @ Wdec + bdec
    z = mu_ref[...] + jnp.exp(0.5 * lv_ref[...]) * n_ref[...]
    o_ref[...] = (
        jnp.dot(z.astype(jnp.bfloat16), wd_ref[...].astype(jnp.bfloat16),
                preferred_element_type=jnp.float32)
        + bd_ref[...]
    )


def reparam_decode_pallas(mu_sel, lv_sel, noise, wdec, bdec):
    """mu/lv/noise: [M, 4*D] (hidden slices 1..4), wdec:[4D,128] -> [M, 7]."""
    M, K = mu_sel.shape
    ND = wdec.shape[1]
    tm = min(_round_up(M, 8), 256)
    Mp = _round_up(M, tm)
    if Mp != M:
        pad = ((0, Mp - M), (0, 0))
        mu_sel = jnp.pad(mu_sel, pad)
        lv_sel = jnp.pad(lv_sel, pad)
        noise = jnp.pad(noise, pad)
    out = pl.pallas_call(
        _reparam_decode_kernel,
        out_shape=jax.ShapeDtypeStruct((Mp, ND), jnp.float32),
        grid=(Mp // tm,),
        in_specs=[
            pl.BlockSpec((tm, K), lambda i: (i, 0)),
            pl.BlockSpec((tm, K), lambda i: (i, 0)),
            pl.BlockSpec((tm, K), lambda i: (i, 0)),
            pl.BlockSpec((K, ND), lambda i: (0, 0)),
            pl.BlockSpec((1, ND), lambda i: (0, 0)),
        ],
        out_specs=pl.BlockSpec((tm, ND), lambda i: (i, 0)),
        compiler_params=pltpu.CompilerParams(dimension_semantics=("parallel",)),
    )(mu_sel, lv_sel, noise, wdec, bdec.reshape(1, -1))
    return out[:M, :DEC_OUT]


def _attention_kernel(pm_ref, pr_ref, out_ref, att_ref):
    # Batched over G (batch,node) pairs:
    #   a = pm @ pr^T ; A = softmax(a, -1) ; out = A @ pr   (pm = po_z @ M)
    pm = pm_ref[...]                                         # [G, H, D]
    pr = pr_ref[...]                                         # [G, H, D]
    s = jnp.einsum("ghd,gkd->ghk", pm, pr, preferred_element_type=jnp.float32)
    s = s - jnp.max(s, axis=-1, keepdims=True)
    e = jnp.exp(s)
    A = e / jnp.sum(e, axis=-1, keepdims=True)
    out_ref[...] = jnp.einsum("ghk,gkd->ghd", A, pr,
                              preferred_element_type=jnp.float32)
    att_ref[...] = A


def attention_pallas(po_z, pr_z, M_param):
    """Attention.attention(po_z, pr_z) for [BN, H, D] tensors (flattened B*N)."""
    BN, H, D = po_z.shape
    # Stage 1: one big MXU-shaped matmul for po_z @ M.
    pm = linear_pallas(po_z.reshape(BN * H, D), M_param,
                       jnp.zeros((D,), jnp.float32)).reshape(BN, H, D)
    # Stage 2: batched bilinear-softmax attention, G pairs per grid step.
    G = min(BN, 64)
    BNp = _round_up(BN, G)
    if BNp != BN:
        pad = ((0, BNp - BN), (0, 0), (0, 0))
        pm = jnp.pad(pm, pad)
        pr_z = jnp.pad(pr_z, pad)
    out, A = pl.pallas_call(
        _attention_kernel,
        grid=(BNp // G,),
        out_shape=(
            jax.ShapeDtypeStruct((BNp, H, D), jnp.float32),
            jax.ShapeDtypeStruct((BNp, H, H), jnp.float32),
        ),
        in_specs=[
            pl.BlockSpec((G, H, D), lambda i: (i, 0, 0)),
            pl.BlockSpec((G, H, D), lambda i: (i, 0, 0)),
        ],
        out_specs=(
            pl.BlockSpec((G, H, D), lambda i: (i, 0, 0)),
            pl.BlockSpec((G, H, H), lambda i: (i, 0, 0)),
        ),
        compiler_params=pltpu.CompilerParams(dimension_semantics=("parallel",)),
    )(pm, pr_z)
    return out[:BN], A[:BN]


def _kl_pair_kernel(pem, pel, qem, qel, pzm, pzl, qzm, qzl, o_ref):
    # Accumulates both KL sums (eps and z) across the row-tile grid.
    @pl.when(pl.program_id(0) == 0)
    def _():
        o_ref[0, 0] = 0.0
        o_ref[0, 1] = 0.0

    def _kl(pm, pv, qm, qv):
        return 0.5 * (qv - pv + (jnp.exp(pv) + (pm - qm) ** 2) * jnp.exp(-qv) - 1.0)

    o_ref[0, 0] += jnp.sum(_kl(pem[...], pel[...], qem[...], qel[...]))
    o_ref[0, 1] += jnp.sum(_kl(pzm[...], pzl[...], qzm[...], qzl[...]))


def kl_pair_pallas(*arrays):
    """8 arrays [M, HD]: (po_eps_mu, po_eps_lv, pr_eps_mu, pr_eps_lv,
                          po_z_mu, po_z_lv, pr_z_mu, pr_z_lv) -> two scalars."""
    M, HD = arrays[0].shape
    tm = min(_round_up(M, 8), 256)
    Mp = _round_up(M, tm)
    if Mp != M:
        arrays = tuple(jnp.pad(a, ((0, Mp - M), (0, 0))) for a in arrays)
    out = pl.pallas_call(
        _kl_pair_kernel,
        out_shape=jax.ShapeDtypeStruct((1, 2), jnp.float32),
        grid=(Mp // tm,),
        in_specs=[pl.BlockSpec((tm, HD), lambda i: (i, 0))] * 8,
        out_specs=pl.BlockSpec((1, 2), lambda i: (0, 0),
                               memory_space=pltpu.MemorySpace.SMEM),
        compiler_params=pltpu.CompilerParams(dimension_semantics=("arbitrary",)),
    )(*arrays)
    return out[0, 0], out[0, 1]


# ----------------------------------------------------------------------------
# Deterministic parameter init (fused / block-diagonal weights)
# ----------------------------------------------------------------------------

def init_params(key, n_nodes):
    tpos_c, poi_c, wea_c = CONTEXT_CHANNELS
    tpos_d, poi_d, wea_d = CONTEXT_DIMS
    H, D = HIDDEN_NUM, HIDDEN_DIM
    HD = H * D
    ctx_dim = tpos_d + poi_d + wea_d                       # 96
    flow_dim = sum(INPUT_CHANNELS)                         # 7

    keys = iter(jax.random.split(key, 64))

    def dense(k_in, k_out, scale=0.1):
        w = jax.random.normal(next(keys), (k_in, k_out), jnp.float32) * scale
        b = jnp.zeros((k_out,), jnp.float32)
        return w, b

    p = {}
    p["POI_vector"] = jax.random.normal(next(keys), (n_nodes, poi_c), jnp.float32)
    p["att_M"] = jax.random.normal(next(keys), (D, D), jnp.float32)  # std=1 as in module

    for pre in ("prior", "post"):
        p[f"{pre}_tpos_w"], p[f"{pre}_tpos_b"] = dense(tpos_c, tpos_d)
        p[f"{pre}_POI_w"], p[f"{pre}_POI_b"] = dense(poi_c, poi_d)
        p[f"{pre}_weather_w"], p[f"{pre}_weather_b"] = dense(wea_c, wea_d)

    # PriorNet surrogate (mu/logvar pairs fused into [.., 2*HD] weights)
    p["pr_eps_w"], p["pr_eps_b"] = dense(ctx_dim, 2 * HD)
    p["pr_hid_w"], p["pr_hid_b"] = dense(ctx_dim + HD, HD)
    p["pr_z_w"], p["pr_z_b"] = dense(HD, 2 * HD)

    # PosteriorNet surrogate
    p["po_eps_w"], p["po_eps_b"] = dense(ctx_dim + flow_dim, 2 * HD)
    p["po_hid_w"], p["po_hid_b"] = dense(ctx_dim + flow_dim + HD, HD)
    p["po_z_w"], p["po_z_b"] = dense(HD, 2 * HD)

    # Decoders fused into one block-diagonal [4*D, 128] weight (lane-dense out).
    dec_w = jnp.zeros((4 * D, DEC_PAD), jnp.float32)
    off = 0
    for i, c in enumerate(INPUT_CHANNELS):
        w_i, _ = dense(D, c)
        dec_w = dec_w.at[i * D:(i + 1) * D, off:off + c].set(w_i)
        off += c
    p["dec_w"] = dec_w
    p["dec_b"] = jnp.zeros((DEC_PAD,), jnp.float32)
    return p


# ----------------------------------------------------------------------------
# CCausalHMM forward
# ----------------------------------------------------------------------------

def ccausal_hmm_forward(params, tpos, weather, bike_flow, taxi_flow, bus_flow,
                        speed, key, test=False, pred_z_init="attention"):
    B, Nn, T, _ = bike_flow.shape
    H, D = HIDDEN_NUM, HIDDEN_DIM
    HD = H * D
    BN = B * Nn
    f32 = jnp.float32

    # ---- loop-invariant POI projections (reused everywhere incl. Generator_next)
    POI_vec = jnp.broadcast_to(params["POI_vector"][None],
                               (B, Nn, params["POI_vector"].shape[-1]))
    POI2 = POI_vec.reshape(BN, -1)
    prior_POI_f = linear_pallas(POI2, params["prior_POI_w"], params["prior_POI_b"])
    post_POI_f = linear_pallas(POI2, params["post_POI_w"], params["post_POI_b"])

    # ---- hoist context projections out of the time loop: one [T*BN, C] slab each
    def to_tbn(x):  # [B, N, T, C] -> [T*BN, C]
        return jnp.transpose(x, (2, 0, 1, 3)).reshape(T * BN, x.shape[-1])

    tpos_tbn, wea_tbn = to_tbn(tpos), to_tbn(weather)
    pr_tpos_all = linear_pallas(tpos_tbn, params["prior_tpos_w"],
                                params["prior_tpos_b"]).reshape(T, BN, -1)
    pr_wea_all = linear_pallas(wea_tbn, params["prior_weather_w"],
                               params["prior_weather_b"]).reshape(T, BN, -1)
    po_tpos_all = linear_pallas(tpos_tbn, params["post_tpos_w"],
                                params["post_tpos_b"]).reshape(T, BN, -1)
    po_wea_all = linear_pallas(wea_tbn, params["post_weather_w"],
                               params["post_weather_b"]).reshape(T, BN, -1)

    def flows_tbn(x):
        return jnp.transpose(x, (2, 0, 1, 3)).reshape(T, BN, x.shape[-1])

    bike_t, taxi_t = flows_tbn(bike_flow), flows_tbn(taxi_flow)
    bus_t, spd_t = flows_tbn(bus_flow), flows_tbn(speed)

    # ---- noise (zeros in test mode => reparameterize returns mu)
    key, k_po, k_gen, k_next = jax.random.split(key, 4)
    if test:
        noise_po = jnp.zeros((T - 1, BN, HD), f32)
        noise_gen = jnp.zeros((T - 1, BN, 4 * D), f32)
        noise_next = jnp.zeros((BN, 4 * D), f32)
    else:
        noise_po = jax.random.normal(k_po, (T - 1, BN, HD), f32)
        noise_gen = jax.random.normal(k_gen, (T - 1, BN, 4 * D), f32)
        noise_next = jax.random.normal(k_next, (BN, 4 * D), f32)

    # ---- helpers shared between the scan step and Generator_next
    def prior_step(pr_tpos_t, pr_wea_t, h_last):
        pr_ctx = jnp.concatenate([pr_tpos_t, prior_POI_f, pr_wea_t], axis=-1)
        pr_hidden = linear_pallas(jnp.concatenate([pr_ctx, h_last], axis=-1),
                                  params["pr_hid_w"], params["pr_hid_b"],
                                  activation="tanh")
        pr_z = linear_pallas(pr_hidden, params["pr_z_w"], params["pr_z_b"])
        return pr_ctx, pr_z[:, :HD], pr_z[:, HD:]

    def attend(po_mu_last_flat, pr_z_mu_flat):
        out, _ = attention_pallas(po_mu_last_flat.reshape(BN, H, D),
                                  pr_z_mu_flat.reshape(BN, H, D),
                                  params["att_M"])
        return out.reshape(BN, HD)

    def gen_decode(input_z_mu, input_z_lv, noise):
        # only hidden slices 1..4 feed the decoders
        return reparam_decode_pallas(input_z_mu[:, D:], input_z_lv[:, D:], noise,
                                     params["dec_w"], params["dec_b"])

    # ---- recurrent part as lax.scan (one compiled step)
    def step(carry, xs):
        h_last, eps_kl, z_kl = carry
        (pr_tpos_t, pr_wea_t, po_tpos_t, po_wea_t,
         bike, taxi, bus, spd, n_po, n_gen) = xs

        # prior
        pr_ctx, pr_z_mu, pr_z_lv = prior_step(pr_tpos_t, pr_wea_t, h_last)
        pr_eps = linear_pallas(pr_ctx, params["pr_eps_w"], params["pr_eps_b"])
        pr_eps_mu, pr_eps_lv = pr_eps[:, :HD], pr_eps[:, HD:]

        # posterior (z-projection + reparameterize + decoders fused)
        po_ctx = jnp.concatenate([po_tpos_t, post_POI_f, po_wea_t,
                                  bike, taxi, bus, spd], axis=-1)
        po_eps = linear_pallas(po_ctx, params["po_eps_w"], params["po_eps_b"])
        po_eps_mu, po_eps_lv = po_eps[:, :HD], po_eps[:, HD:]
        po_hidden = linear_pallas(jnp.concatenate([po_ctx, h_last], axis=-1),
                                  params["po_hid_w"], params["po_hid_b"],
                                  activation="tanh")
        po_z_mu, po_z_lv, po_z_cur, rec7 = posterior_z_decode_pallas(
            po_hidden, params["po_z_w"], params["po_z_b"], n_po,
            params["dec_w"], params["dec_b"])

        # generator for the current step (result at t=0 is discarded afterwards,
        # matching the reference which only generates for t >= 1)
        if pred_z_init == "attention":
            input_z_mu = attend(h_last, pr_z_mu)
        else:  # 'origin'
            input_z_mu = pr_z_mu
        gen7 = gen_decode(input_z_mu, pr_z_lv, n_gen)

        # both KL terms of this step in one gridded reduction kernel
        d_eps, d_z = kl_pair_pallas(po_eps_mu, po_eps_lv, pr_eps_mu, pr_eps_lv,
                                    po_z_mu, po_z_lv, pr_z_mu, pr_z_lv)

        new_carry = (po_z_mu, eps_kl + d_eps, z_kl + d_z)
        ys = (po_z_mu, po_z_lv, po_z_cur, rec7, gen7)
        return new_carry, ys

    h0 = jnp.zeros((BN, HD), f32)
    carry0 = (h0, jnp.zeros((), f32), jnp.zeros((), f32))
    xs = (pr_tpos_all[:T - 1], pr_wea_all[:T - 1],
          po_tpos_all[:T - 1], po_wea_all[:T - 1],
          bike_t[:T - 1], taxi_t[:T - 1], bus_t[:T - 1], spd_t[:T - 1],
          noise_po, noise_gen)
    (h_final, eps_kl_sum, z_kl_sum), ys = lax.scan(step, carry0, xs)
    po_z_mu_stack, po_z_lv_stack, po_z_stack, rec_stack, gen_stack = ys

    # ---- reshape scan outputs back to [B, N, time, channels]
    def to_bnt(x):  # [tt, BN, c] -> [B, N, tt, c]
        tt, _, c = x.shape
        return jnp.transpose(x.reshape(tt, B, Nn, c), (1, 2, 0, 3))

    rec_all = to_bnt(rec_stack)                                  # [B,N,T-1,7]
    rec_bike, rec_taxi = rec_all[..., 0:2], rec_all[..., 2:4]
    rec_bus, rec_speed = rec_all[..., 4:6], rec_all[..., 6:7]

    po_z_mu_list = [po_z_mu_stack[i].reshape(B, Nn, H, D) for i in range(T - 1)]
    po_z_logvar_list = [po_z_lv_stack[i].reshape(B, Nn, H, D) for i in range(T - 1)]
    po_z_list = [po_z_stack[i].reshape(B, Nn, H, D) for i in range(T - 1)]

    eps_kl_loss = (eps_kl_sum / (T - 1)).reshape(1)
    z_kl_loss = (z_kl_sum / (T - 1)).reshape(1)

    # ---- Generator_next on the last time step (prior features already hoisted,
    #      POI features reused instead of recomputed)
    _, pr_z_mu_n, pr_z_lv_n = prior_step(pr_tpos_all[T - 1], pr_wea_all[T - 1], h_final)
    if pred_z_init == "attention":
        input_z_mu_n = attend(h_final, pr_z_mu_n)
    else:
        input_z_mu_n = pr_z_mu_n
    gen_next7 = gen_decode(input_z_mu_n, pr_z_lv_n, noise_next)   # [BN, 7]

    gen_scan = to_bnt(gen_stack[1:])                              # t = 1 .. T-2
    gen_all = jnp.concatenate(
        [gen_scan, gen_next7.reshape(B, Nn, 1, DEC_OUT)], axis=2)  # [B,N,T-1,7]
    gen_bike, gen_taxi = gen_all[..., 0:2], gen_all[..., 2:4]
    gen_bus, gen_speed = gen_all[..., 4:6], gen_all[..., 6:7]

    return (po_z_mu_list, po_z_logvar_list, po_z_list, eps_kl_loss, z_kl_loss,
            [rec_bike, rec_taxi, rec_bus, rec_speed],
            [gen_bike, gen_taxi, gen_bus, gen_speed])


# ----------------------------------------------------------------------------
# Demo
# ----------------------------------------------------------------------------

if __name__ == "__main__":
    B, Nn, T = 2, 8, 4
    tpos_c, poi_c, wea_c = CONTEXT_CHANNELS

    root = jax.random.PRNGKey(0)
    (k_param, k_tpos, k_wea, k_bike, k_taxi,
     k_bus, k_speed, k_run) = jax.random.split(root, 8)

    params = init_params(k_param, Nn)

    tpos = jax.random.normal(k_tpos, (B, Nn, T, tpos_c), jnp.float32)
    weather = jax.random.normal(k_wea, (B, Nn, T, wea_c), jnp.float32)
    bike_flow = jax.random.normal(k_bike, (B, Nn, T, INPUT_CHANNELS[0]), jnp.float32)
    taxi_flow = jax.random.normal(k_taxi, (B, Nn, T, INPUT_CHANNELS[1]), jnp.float32)
    bus_flow = jax.random.normal(k_bus, (B, Nn, T, INPUT_CHANNELS[2]), jnp.float32)
    speed = jax.random.normal(k_speed, (B, Nn, T, INPUT_CHANNELS[3]), jnp.float32)

    outputs = ccausal_hmm_forward(
        params, tpos, weather, bike_flow, taxi_flow, bus_flow, speed,
        key=k_run, test=False, pred_z_init="attention")

    jax.block_until_ready(jax.tree_util.tree_leaves(outputs))

    # sanity on shapes
    recs, gens = outputs[5], outputs[6]
    assert recs[0].shape == (B, Nn, T - 1, 2) and recs[3].shape == (B, Nn, T - 1, 1)
    assert gens[0].shape == (B, Nn, T - 1, 2) and gens[3].shape == (B, Nn, T - 1, 1)
    assert outputs[0][0].shape == (B, Nn, HIDDEN_NUM, HIDDEN_DIM)
    assert outputs[3].shape == (1,) and outputs[4].shape == (1,)

    print("KERNEL_OK")
</pallas_src>

<mosaic_0001>
module attributes {stable_mosaic.version = 11 : i64} {
  func.func @_linear_kernel(%arg0: i32, %arg1: memref<16x5xf32, #tpu.memory_space<vmem>>, %arg2: memref<5x32xf32, #tpu.memory_space<vmem>>, %arg3: memref<1x32xf32, #tpu.memory_space<vmem>>, %arg4: memref<16x32xf32, #tpu.memory_space<vmem>>) attributes {dimension_semantics = [#tpu.dimension_semantics<parallel>], iteration_bounds = array<i64: 1>, scalar_prefetch = 0 : i64, scratch_operands = 0 : i64, tpu.core_type = #tpu.core_type<tc>, window_params = [{transform_indices = @transform_0, window_bounds = array<i64: 16, 5>}, {pipeline_mode = #tpu.pipeline_mode<synchronous>, transform_indices = @transform_1, window_bounds = array<i64: 5, 32>}, {pipeline_mode = #tpu.pipeline_mode<synchronous>, transform_indices = @transform_2, window_bounds = array<i64: 1, 32>}, {transform_indices = @transform_3, window_bounds = array<i64: 16, 32>}]} {
    %c0 = arith.constant 0 : index
    %c0_0 = arith.constant 0 : index
    %0 = vector.load %arg1[%c0, %c0_0] : memref<16x5xf32, #tpu.memory_space<vmem>>, vector<16x5xf32>
    %1 = arith.truncf %0 : vector<16x5xf32> to vector<16x5xbf16>
    %c0_1 = arith.constant 0 : index
    %c0_2 = arith.constant 0 : index
    %2 = vector.load %arg2[%c0_1, %c0_2] : memref<5x32xf32, #tpu.memory_space<vmem>>, vector<5x32xf32>
    %3 = arith.truncf %2 : vector<5x32xf32> to vector<5x32xbf16>
    %cst = arith.constant dense<0.000000e+00> : vector<16x32xf32>
    %4 = tpu.matmul %1, %3, %cst {dimension_numbers = #tpu.dot_dimension_numbers<[1], [0], [0], [1], [0, 0, 1, 1], [], []>} : vector<16x5xbf16>, vector<5x32xbf16>, vector<16x32xf32> -> vector<16x32xf32>
    %c0_3 = arith.constant 0 : index
    %c0_4 = arith.constant 0 : index
    %5 = vector.load %arg3[%c0_3, %c0_4] : memref<1x32xf32, #tpu.memory_space<vmem>>, vector<1x32xf32>
    %6 = vector.broadcast %5 : vector<1x32xf32> to vector<16x32xf32>
    %7 = arith.addf %4, %6 : vector<16x32xf32>
    %c0_5 = arith.constant 0 : index
    %c0_6 = arith.constant 0 : index
    %8 = vector.load %arg4[%c0_5, %c0_6] : memref<16x32xf32, #tpu.memory_space<vmem>>, vector<16x32xf32>
    tpu.vector_store %arg4[%c0_5, %c0_6], %7 {strides = array<i32>} : memref<16x32xf32, #tpu.memory_space<vmem>>, vector<16x32xf32>,
    return
  }
  func.func @transform_0(%arg0: i32) -> (i32, i32) {
    %c0_i32 = arith.constant 0 : i32
    %c0_i32_0 = arith.constant 0 : i32
    return %arg0, %c0_i32 : i32, i32
  }
  func.func @transform_1(%arg0: i32) -> (i32, i32) {
    %c0_i32 = arith.constant 0 : i32
    %c0_i32_0 = arith.constant 0 : i32
    %c0_i32_1 = arith.constant 0 : i32
    return %c0_i32, %c0_i32_0 : i32, i32
  }
  func.func @transform_2(%arg0: i32) -> (i32, i32) {
    %c0_i32 = arith.constant 0 : i32
    %c0_i32_0 = arith.constant 0 : i32
    %c0_i32_1 = arith.constant 0 : i32
    return %c0_i32, %c0_i32_0 : i32, i32
  }
  func.func @transform_3(%arg0: i32) -> (i32, i32) {
    %c0_i32 = arith.constant 0 : i32
    %c0_i32_0 = arith.constant 0 : i32
    return %arg0, %c0_i32 : i32, i32
  }
}

</mosaic_0001>

<llo_original>
// kernel: tpu_custom_call.1
$region0: #{tpu_custom_call.1}
  #allocation0 [shape = 'u32[]', space=smem, size = 0x4, offset = 0x4, fixed_abs, tag = 'smem constant byte address 0x4 - core index']
  #allocation1 [shape = 'u32[144,128]{1,0:T(1,128)}', space=vmem, size = 0x12000, scoped, tag = 'internal scratch']
  %s0 = inlined_call_operand.vmem [shape: f32[16,5], index: 0, kind: input, shape index: {}]
  %s1 = inlined_call_operand.vmem [shape: f32[5,32], index: 1, kind: input, shape index: {}]
  %s2 = inlined_call_operand.vmem [shape: f32[1,32], index: 2, kind: input, shape index: {}]
  %s3 = inlined_call_operand.hbm [shape: f32[16,32], index: 3, kind: output, shape index: {}]
  %s4 = sld [smem:[#allocation0]]
  $region22: #{tpu_custom_call.1} parent=0
    _
  %s6 = ssub.s32 1, %s4
  %s7 = scalar_select 0, %s6, %s4
  $region1: #{tpu_custom_call.1} parent=0
    #allocation2 [shape = 'u8[8192]{0}', space=vmem, size = 0x2000, scoped, tag = 'output window, operand 0, single buffered']
    #allocation3 [shape = 's32[1]{0}', space=sflag, size = 0x4, scoped, tag = 'scoped memory for tpu_custom_call.1']
    %8 = vsyncpa [#allocation3], 0
    // Predicated region
    $region2: #{tpu_custom_call.1} parent=1 // pred_check
      _
    $region3: #{tpu_custom_call.1} parent=1 // pred_check_branch
      %10 = sbr.rel (0) target = $region5
    $region4: #{tpu_custom_call.1} parent=1 // pred_region
      _
    $region5: #{tpu_custom_call.1} parent=1 // pred_fallthru
      _
    // Predicated region
    $region6: #{tpu_custom_call.1} parent=1 // pred_check
      _
    $region7: #{tpu_custom_call.1} parent=1 // pred_check_branch
      %12 = sbr.rel (0) target = $region9
    $region8: #{tpu_custom_call.1} parent=1 // pred_region
      _
    $region9: #{tpu_custom_call.1} parent=1 // pred_fallthru
      _
    // Predicated region
    $region10: #{tpu_custom_call.1} parent=1 // pred_check
      _
    $region11: #{tpu_custom_call.1} parent=1 // pred_check_branch
      %14 = sbr.rel (0) target = $region13
    $region12: #{tpu_custom_call.1} parent=1 // pred_region
      _
    $region13: #{tpu_custom_call.1} parent=1 // pred_fallthru
      _
    %v16 = vld [vmem:[%s0] sm:$0xff]
    %v17 = vld [vmem:[%s0 + $0x8] sm:$0xff]
    %v18 = vpack.c.bf16 %v17, %v16
    %v19 = vld [vmem:[%s1] sm:$0x1f]
    %v20 = vpack.c.bf16 %v19, %v19
    %v21 = vld [vmem:[%s2] sm:$0x1]
    %v23 = vlaneseq
    %v24 = vshrl.u32 %v23, 7
    %v25 = vsub.s32 0, %v24
    %v26 = vrot.slane %v21, %v25
    %vm28 = vcmask 39936
    %v30 = vsel %vm28, %v18, 0
    %vm32 = vcmask 1041408
    %vm33 = vcmask 1042432
    %v34 = vsel %vm32, 4294967295, 65535
    %v35 = vsel %vm33, %v34, 0
    %v37 = vand.u32 %v20, %v35
    %39 = vmatprep.subr.bf16.mxu0 0
    %40 = vmatpush1.bf16.msra.mxu0 %v37
    %41 = vmatprep.subr.bf16.mxu0 0
    %42 = vmatpush1.bf16.msra.mxu0 0
    %43 = vmatprep.subr.bf16.mxu0 0
    %44 = vmatpush1.bf16.msra.mxu0 0
    %45 = vmatprep.subr.bf16.mxu0 0
    %46 = vmatpush1.bf16.msra.mxu0 0
    %47 = vmatprep.subr.bf16.mxu0 0
    %48 = vmatpush1.bf16.msra.mxu0 0
    %49 = vmatprep.subr.bf16.mxu0 0
    %50 = vmatpush1.bf16.msra.mxu0 0
    %51 = vmatprep.subr.bf16.mxu0 0
    %52 = vmatpush1.bf16.msra.mxu0 0
    %53 = vmatprep.subr.bf16.mxu0 0
    %54 = vmatpush1.bf16.msra.mxu0 0
    %55 = vmatprep.subr.bf16.mxu0 0
    %56 = vmatpush1.bf16.msra.mxu0 0
    %57 = vmatprep.subr.bf16.mxu0 0
    %58 = vmatpush1.bf16.msra.mxu0 0
    %59 = vmatprep.subr.bf16.mxu0 0
    %60 = vmatpush1.bf16.msra.mxu0 0
    %61 = vmatprep.subr.bf16.mxu0 0
    %62 = vmatpush1.bf16.msra.mxu0 0
    %63 = vmatprep.subr.bf16.mxu0 0
    %64 = vmatpush1.bf16.msra.mxu0 0
    %65 = vmatprep.subr.bf16.mxu0 0
    %66 = vmatpush1.bf16.msra.mxu0 0
    %67 = vmatprep.subr.bf16.mxu0 0
    %68 = vmatpush1.bf16.msra.mxu0 0
    %69 = vmatprep.subr.bf16.mxu0 0
    %70 = vmatpush1.bf16.msra.mxu0 0
    %71 = vmatprep.mubr.bf16.mxu0 0
    %72 = vmatmul.mubr.bf16.gmra.mrb[0].mxu0 %v30
    %v73 = vpop.f32.mrb[0].mxu0
    %v74 = vadd.f32 %v26, %v73
    %v75 = vpop.f32.mrb[0].mxu0
    %v76 = vpop.f32.mrb[0].mxu0
    %v77 = vadd.f32 %v26, %v76
    %v78 = vpop.f32.mrb[0].mxu0
    %79 = vdwg.mxu0
    %vm80 = vcmask 261120
    %81 = vst.msk [vmem:[#allocation2] sm:$0xff] %vm80, %v74
    %82 = vst.msk [vmem:[#allocation2 + $0x8] sm:$0xff] %vm80, %v77
    // Predicated region
    $region14: #{tpu_custom_call.1} parent=1 // pred_check
      _
    $region15: #{tpu_custom_call.1} parent=1 // pred_check_branch
      %84 = sbr.rel (0) target = $region17
    $region16: #{tpu_custom_call.1} parent=1 // pred_region
      %s86 = ssub.s32 256, 256
      %87 = vsyncadd [#allocation3], %s86
      %s88 = sshll.u32 [#allocation2], 4
      %s89 = int_to_ptr.vmem [resolvable:$true] %s88
      %94 = dma.vmem_to_hbm [thread:$0]  %s89, 256, %s3, [#allocation3], 128, 128, 8
    $region17: #{tpu_custom_call.1} parent=1 // pred_fallthru
      _
    // Predicated region
    $region18: #{tpu_custom_call.1} parent=1 // pred_check
      _
    $region19: #{tpu_custom_call.1} parent=1 // pred_check_branch
      %96 = sbr.rel (0) target = $region21
    $region20: #{tpu_custom_call.1} parent=1 // pred_region
      %97 = dma.done [#allocation3], 256
    $region21: #{tpu_custom_call.1} parent=1 // pred_fallthru
      _
    %98 = vsyncpa [#allocation3], 1

</llo_original>
